<compile_context>
chip_gen: v6e
topology: v6e:2x2x1
jax: 0.10.0
libtpu: 0.0.40
codegen_flags: <defaults>
</compile_context>

<pallas_src>
import functools
import math

import jax
import jax.numpy as jnp
from jax import lax
from jax.experimental import pallas as pl
from jax.experimental.pallas import tpu as pltpu


def fd_intervention_kernel(feat_ref, med_ref, w_ref, b_ref, out_ref, x_ref, *,
                           compute_dtype, unroll):
    # feat/med/out blocks: (block_b, N, D) in the input dtype;
    # w_ref: (D, D) stored (in, out) in compute_dtype; b_ref: (1, D) f32;
    # x_ref: (block_b, N, D) compute_dtype scratch slab for the hoisted fc matmul.
    block_b, N, D = feat_ref.shape
    scale = 1.0 / math.sqrt(D)

    def attn_body(bi, carry):
        f = feat_ref[bi]                               # (N, D), native dtype
        m = med_ref[bi]

        # Shared logits: s1[i, j] = mediator_i . feature_j  (AF1 scores).
        # AF2 scores are exactly s1^T; the transpose is never materialized.
        s1 = lax.dot_general(m, f, (((1,), (1,)), ((), ())),
                             preferred_element_type=jnp.float32) * scale  # (N,N) f32

        f_c = f.astype(compute_dtype)

        # AF1: row softmax of s1, then P1 @ feature (bf16 operands, f32 accumulation).
        e1 = jnp.exp(s1 - jnp.max(s1, axis=1, keepdims=True))
        p1 = e1 * pl.reciprocal(jnp.sum(e1, axis=1, keepdims=True), approx=True)
        v = jnp.dot(p1.astype(compute_dtype), f_c,
                    preferred_element_type=jnp.float32)                   # (N,D) f32

        # AF2: softmax over the *columns* of s1 (== rows of s1^T), applied without a
        # transpose: p2t[j, i] == p2[i, j], and o = p2 @ v == dot(p2t, v) contracting
        # dim 0 (transposed-LHS matmul on the MXU).
        e2 = jnp.exp(s1 - jnp.max(s1, axis=0, keepdims=True))
        p2t = e2 * pl.reciprocal(jnp.sum(e2, axis=0, keepdims=True), approx=True)
        o = lax.dot_general(p2t.astype(compute_dtype), v.astype(compute_dtype),
                            (((0,), (0,)), ((), ())),
                            preferred_element_type=jnp.float32)           # (N,D) f32

        # Residual; fc is hoisted out of the loop (one big MXU matmul per grid step).
        x_ref[bi] = (o + f.astype(jnp.float32)).astype(compute_dtype)
        return carry

    # fori_loop bounds the live ranges of the per-element NxN temporaries (a static
    # Python unroll keeps them all live simultaneously); unroll only when tiny.
    lax.fori_loop(0, block_b, attn_body, 0, unroll=unroll)

    # fc over the whole sub-batch: single (block_b*N, D) @ (D, D) MXU matmul with f32
    # accumulation; bias broadcast happens once (not per unrolled iteration).
    x_all = x_ref[...].reshape(block_b * N, D)
    y = jnp.dot(x_all, w_ref[...], preferred_element_type=jnp.float32) + b_ref[...]
    out_ref[...] = y.reshape(block_b, N, D).astype(out_ref.dtype)


def _tpu_generation_info():
    """Returns (per-core VMEM bytes, whether grid needs >=2 steps for multi-TC)."""
    vmem_cap = 128 << 20
    try:
        vmem_cap = int(pltpu.get_tpu_info().vmem_capacity_bytes)
    except Exception:
        pass
    multi_core = vmem_cap <= (64 << 20)        # v7x: 64 MiB VMEM, 2 TCs per chip
    try:
        kind = jax.devices()[0].device_kind.lower()
        multi_core = multi_core or ("v7" in kind)
    except Exception:
        pass
    return vmem_cap, multi_core


def _pick_block_b(B, N, D, itemsize, vmem_cap, multi_core):
    """Batch elements per grid step: amortize per-step overhead (~0.35 us) at small
    N/D.  Budget is larger on single-TC v5e/v6e (128 MiB VMEM) than on v7x; the
    ">=2 grid steps" rule only applies where there are 2 TensorCores to feed."""
    budget = (16 << 20) if vmem_cap >= (96 << 20) else (6 << 20)
    per_elem = (3 * N * D * itemsize      # f, m, out pipeline blocks
                + 4 * N * N * 4           # s1 / e1 / e2 / p temporaries (f32)
                + 2 * N * D * 4           # v, o (f32)
                + N * D * 2)              # x slab row (bf16)
    cap = max(1, min(B, 16, budget // max(per_elem, 1)))
    if multi_core and B >= 2:
        cap = min(cap, max(1, B // 2))     # keep >=2 grid steps for both v7x TCs
    bt = int(cap)
    while B % bt:
        bt -= 1
    return bt


def _vmem_limit_bytes(block_b, N, D, in_itemsize, c_itemsize, vmem_cap):
    per_step = block_b * (3 * N * D * in_itemsize     # f, m, out blocks
                          + 4 * N * N * 4             # score/prob temporaries (f32)
                          + 2 * N * D * 4             # v, o (f32)
                          + N * D * c_itemsize)       # x slab (compute dtype)
    est = 2 * per_step + 2 * D * D * c_itemsize + 8 * D * 4 + (8 << 20)
    # Leave >=16 MiB headroom below physical VMEM for compiler scratch / semaphores
    # (=> ~48 MiB ceiling on v7x, ~112 MiB on v5e/v6e).
    ceiling = max(vmem_cap - (16 << 20), 32 << 20)
    return int(min(max(est, 32 << 20), ceiling))


def fd_intervention(feature, mediator, fc_weight, fc_bias, *, block_b=None,
                    compute_dtype=jnp.bfloat16):
    """feature, mediator: [B, N, D]; fc_weight: [D, D] (PyTorch [out, in]); fc_bias: [D].

    MXU matmul operands (softmax probs, V, residual slab, fc weight) run in
    `compute_dtype` (bf16 by default) with f32 accumulation; logits keep the input
    dtype's precision."""
    B, N, D = feature.shape
    assert mediator.shape == (B, N, D)
    assert fc_weight.shape == (D, D) and fc_bias.shape == (D,)

    vmem_cap, multi_core = _tpu_generation_info()
    if block_b is None:
        block_b = _pick_block_b(B, N, D, feature.dtype.itemsize, vmem_cap, multi_core)
    assert B % block_b == 0, (B, block_b)

    c_itemsize = jnp.dtype(compute_dtype).itemsize
    w_c = fc_weight.T.astype(compute_dtype)             # (in, out): kernel does x @ w_c
    b2 = fc_bias.reshape(1, D).astype(jnp.float32)

    # Unroll the sub-batch loop only when its per-iteration working set is tiny.
    unroll = (N * (N + D) * 4) <= (96 << 10)

    kernel = functools.partial(fd_intervention_kernel,
                               compute_dtype=compute_dtype, unroll=unroll)

    return pl.pallas_call(
        kernel,
        out_shape=jax.ShapeDtypeStruct((B, N, D), feature.dtype),
        grid_spec=pltpu.PrefetchScalarGridSpec(
            num_scalar_prefetch=0,
            grid=(B // block_b,),
            in_specs=[
                pl.BlockSpec((block_b, N, D), lambda b: (b, 0, 0)),
                pl.BlockSpec((block_b, N, D), lambda b: (b, 0, 0)),
                # Constant block index: fetched once, resident across the whole grid.
                pl.BlockSpec((D, D), lambda b: (0, 0)),
                pl.BlockSpec((1, D), lambda b: (0, 0)),
            ],
            out_specs=pl.BlockSpec((block_b, N, D), lambda b: (b, 0, 0)),
            scratch_shapes=[pltpu.VMEM((block_b, N, D), compute_dtype)],
        ),
        compiler_params=pltpu.CompilerParams(
            dimension_semantics=("parallel",),
            vmem_limit_bytes=_vmem_limit_bytes(
                block_b, N, D, feature.dtype.itemsize, c_itemsize, vmem_cap),
        ),
    )(feature, mediator, w_c, b2)


def fd_intervention_ref(feature, mediator, fc_weight, fc_bias):
    D = feature.shape[-1]
    scale = 1.0 / math.sqrt(D)
    s1 = jnp.einsum("bnd,bmd->bnm", mediator, feature) * scale
    p1 = jax.nn.softmax(s1, axis=-1)
    v = jnp.einsum("bnm,bmd->bnd", p1, feature)
    s2 = jnp.einsum("bnd,bmd->bnm", feature, mediator) * scale
    p2 = jax.nn.softmax(s2, axis=-1)
    o = jnp.einsum("bnm,bmd->bnd", p2, v)
    return jnp.einsum("bnd,ed->bne", o + feature, fc_weight) + fc_bias


if __name__ == "__main__":
    B, N, D = 2, 16, 128   # embed_dim=128: lane-dense small stand-in for default 512

    key = jax.random.PRNGKey(0)
    k_f, k_m, k_w, k_b = jax.random.split(key, 4)
    feature = jax.random.normal(k_f, (B, N, D), dtype=jnp.float32)
    mediator = jax.random.normal(k_m, (B, N, D), dtype=jnp.float32)

    # Deterministic fc (Linear(embed_dim, embed_dim)) parameters.
    bound = 1.0 / math.sqrt(D)
    fc_weight = jax.random.uniform(k_w, (D, D), minval=-bound, maxval=bound,
                                   dtype=jnp.float32)
    fc_bias = jax.random.uniform(k_b, (D,), minval=-bound, maxval=bound,
                                 dtype=jnp.float32)

    compute_dtype = jnp.bfloat16
    out = fd_intervention(feature, mediator, fc_weight, fc_bias,
                          compute_dtype=compute_dtype)
    out = jax.block_until_ready(out)

    ref = fd_intervention_ref(feature, mediator, fc_weight, fc_bias)
    assert out.shape == (B, N, D)
    # Dtype-aware tolerance: MXU matmul operands (probs / V / residual / fc weight)
    # are bf16 (plus EUP approx-reciprocal softmax normalization); f32 accumulation.
    tol = 2e-2 if compute_dtype == jnp.bfloat16 else 5e-3
    assert jnp.allclose(out, ref, atol=tol, rtol=tol), "mismatch vs reference"

    print("KERNEL_OK")
</pallas_src>

<mosaic_0001>
module attributes {stable_mosaic.version = 11 : i64} {
  func.func @fd_intervention_kernel(%arg0: i32, %arg1: memref<2x16x128xf32, #tpu.memory_space<vmem>>, %arg2: memref<2x16x128xf32, #tpu.memory_space<vmem>>, %arg3: memref<128x128xbf16, #tpu.memory_space<vmem>>, %arg4: memref<1x128xf32, #tpu.memory_space<vmem>>, %arg5: memref<2x16x128xf32, #tpu.memory_space<vmem>>, %arg6: memref<2x16x128xbf16, #tpu.memory_space<vmem>>) attributes {dimension_semantics = [#tpu.dimension_semantics<parallel>], iteration_bounds = array<i64: 1>, scalar_prefetch = 0 : i64, scratch_operands = 1 : i64, tpu.core_type = #tpu.core_type<tc>, window_params = [{transform_indices = @transform_0, window_bounds = array<i64: 2, 16, 128>}, {transform_indices = @transform_1, window_bounds = array<i64: 2, 16, 128>}, {pipeline_mode = #tpu.pipeline_mode<synchronous>, transform_indices = @transform_2, window_bounds = array<i64: 128, 128>}, {pipeline_mode = #tpu.pipeline_mode<synchronous>, transform_indices = @transform_3, window_bounds = array<i64: 1, 128>}, {transform_indices = @transform_4, window_bounds = array<i64: 2, 16, 128>}]} {
    %c0_i32 = arith.constant 0 : i32
    %0 = arith.index_cast %c0_i32 : i32 to index
    %c0 = arith.constant 0 : index
    %c0_0 = arith.constant 0 : index
    %1 = vector.load %arg1[%0, %c0, %c0_0] : memref<2x16x128xf32, #tpu.memory_space<vmem>>, vector<1x16x128xf32>
    %2 = vector.shape_cast %1 : vector<1x16x128xf32> to vector<16x128xf32>
    %3 = arith.index_cast %c0_i32 : i32 to index
    %c0_1 = arith.constant 0 : index
    %c0_2 = arith.constant 0 : index
    %4 = vector.load %arg2[%3, %c0_1, %c0_2] : memref<2x16x128xf32, #tpu.memory_space<vmem>>, vector<1x16x128xf32>
    %5 = vector.shape_cast %4 : vector<1x16x128xf32> to vector<16x128xf32>
    %cst = arith.constant dense<0.000000e+00> : vector<16x16xf32>
    %6 = tpu.matmul %5, %2, %cst {dimension_numbers = #tpu.dot_dimension_numbers<[1], [1], [0], [0], [0, 0, 1, 0], [], []>} : vector<16x128xf32>, vector<16x128xf32>, vector<16x16xf32> -> vector<16x16xf32>
    %cst_3 = arith.constant 0.0883883461 : f32
    %7 = vector.broadcast %cst_3 : f32 to vector<16x16xf32>
    %8 = arith.mulf %6, %7 : vector<16x16xf32>
    %9 = arith.truncf %2 : vector<16x128xf32> to vector<16x128xbf16>
    %cst_4 = arith.constant dense<0xFF800000> : vector<16xf32>
    %10 = vector.multi_reduction <maximumf>, %8, %cst_4 [1] : vector<16x16xf32> to vector<16xf32>
    %11 = vector.shape_cast %10 : vector<16xf32> to vector<16x1xf32>
    %12 = vector.broadcast %11 : vector<16x1xf32> to vector<16x16xf32>
    %13 = arith.subf %8, %12 : vector<16x16xf32>
    %14 = math.exp %13 : vector<16x16xf32>
    %cst_5 = arith.constant dense<0.000000e+00> : vector<16xf32>
    %15 = vector.multi_reduction <add>, %14, %cst_5 [1] : vector<16x16xf32> to vector<16xf32>
    %16 = vector.shape_cast %15 : vector<16xf32> to vector<16x1xf32>
    %17 = tpu.reciprocal %16 {approx = true} : vector<16x1xf32> -> vector<16x1xf32>
    %18 = vector.broadcast %17 : vector<16x1xf32> to vector<16x16xf32>
    %19 = arith.mulf %14, %18 : vector<16x16xf32>
    %20 = arith.truncf %19 : vector<16x16xf32> to vector<16x16xbf16>
    %cst_6 = arith.constant dense<0.000000e+00> : vector<16x128xf32>
    %21 = tpu.matmul %20, %9, %cst_6 {dimension_numbers = #tpu.dot_dimension_numbers<[1], [0], [0], [1], [0, 0, 1, 1], [], []>} : vector<16x16xbf16>, vector<16x128xbf16>, vector<16x128xf32> -> vector<16x128xf32>
    %cst_7 = arith.constant dense<0xFF800000> : vector<16xf32>
    %22 = vector.multi_reduction <maximumf>, %8, %cst_7 [0] : vector<16x16xf32> to vector<16xf32>
    %23 = vector.shape_cast %22 : vector<16xf32> to vector<1x16xf32>
    %24 = vector.broadcast %23 : vector<1x16xf32> to vector<16x16xf32>
    %25 = arith.subf %8, %24 : vector<16x16xf32>
    %26 = math.exp %25 : vector<16x16xf32>
    %cst_8 = arith.constant dense<0.000000e+00> : vector<16xf32>
    %27 = vector.multi_reduction <add>, %26, %cst_8 [0] : vector<16x16xf32> to vector<16xf32>
    %28 = vector.shape_cast %27 : vector<16xf32> to vector<1x16xf32>
    %29 = tpu.reciprocal %28 {approx = true} : vector<1x16xf32> -> vector<1x16xf32>
    %30 = vector.broadcast %29 : vector<1x16xf32> to vector<16x16xf32>
    %31 = arith.mulf %26, %30 : vector<16x16xf32>
    %32 = arith.truncf %31 : vector<16x16xf32> to vector<16x16xbf16>
    %33 = arith.truncf %21 : vector<16x128xf32> to vector<16x128xbf16>
    %cst_9 = arith.constant dense<0.000000e+00> : vector<16x128xf32>
    %34 = tpu.matmul %32, %33, %cst_9 {dimension_numbers = #tpu.dot_dimension_numbers<[0], [0], [1], [1], [0, 1, 1, 1], [], []>} : vector<16x16xbf16>, vector<16x128xbf16>, vector<16x128xf32> -> vector<16x128xf32>
    %35 = arith.addf %34, %2 : vector<16x128xf32>
    %36 = arith.truncf %35 : vector<16x128xf32> to vector<16x128xbf16>
    %37 = arith.index_cast %c0_i32 : i32 to index
    %c0_10 = arith.constant 0 : index
    %c0_11 = arith.constant 0 : index
    %38 = vector.load %arg6[%37, %c0_10, %c0_11] : memref<2x16x128xbf16, #tpu.memory_space<vmem>>, vector<1x16x128xbf16>
    %39 = vector.shape_cast %38 : vector<1x16x128xbf16> to vector<16x128xbf16>
    %40 = vector.shape_cast %36 : vector<16x128xbf16> to vector<1x16x128xbf16>
    tpu.vector_store %arg6[%37, %c0_10, %c0_11], %40 {strides = array<i32>} : memref<2x16x128xbf16, #tpu.memory_space<vmem>>, vector<1x16x128xbf16>,
    %c1_i32 = arith.constant 1 : i32
    %41 = arith.index_cast %c1_i32 : i32 to index
    %c0_12 = arith.constant 0 : index
    %c0_13 = arith.constant 0 : index
    %42 = vector.load %arg1[%41, %c0_12, %c0_13] : memref<2x16x128xf32, #tpu.memory_space<vmem>>, vector<1x16x128xf32>
    %43 = vector.shape_cast %42 : vector<1x16x128xf32> to vector<16x128xf32>
    %44 = arith.index_cast %c1_i32 : i32 to index
    %c0_14 = arith.constant 0 : index
    %c0_15 = arith.constant 0 : index
    %45 = vector.load %arg2[%44, %c0_14, %c0_15] : memref<2x16x128xf32, #tpu.memory_space<vmem>>, vector<1x16x128xf32>
    %46 = vector.shape_cast %45 : vector<1x16x128xf32> to vector<16x128xf32>
    %cst_16 = arith.constant dense<0.000000e+00> : vector<16x16xf32>
    %47 = tpu.matmul %46, %43, %cst_16 {dimension_numbers = #tpu.dot_dimension_numbers<[1], [1], [0], [0], [0, 0, 1, 0], [], []>} : vector<16x128xf32>, vector<16x128xf32>, vector<16x16xf32> -> vector<16x16xf32>
    %cst_17 = arith.constant 0.0883883461 : f32
    %48 = vector.broadcast %cst_17 : f32 to vector<16x16xf32>
    %49 = arith.mulf %47, %48 : vector<16x16xf32>
    %50 = arith.truncf %43 : vector<16x128xf32> to vector<16x128xbf16>
    %cst_18 = arith.constant dense<0xFF800000> : vector<16xf32>
    %51 = vector.multi_reduction <maximumf>, %49, %cst_18 [1] : vector<16x16xf32> to vector<16xf32>
    %52 = vector.shape_cast %51 : vector<16xf32> to vector<16x1xf32>
    %53 = vector.broadcast %52 : vector<16x1xf32> to vector<16x16xf32>
    %54 = arith.subf %49, %53 : vector<16x16xf32>
    %55 = math.exp %54 : vector<16x16xf32>
    %cst_19 = arith.constant dense<0.000000e+00> : vector<16xf32>
    %56 = vector.multi_reduction <add>, %55, %cst_19 [1] : vector<16x16xf32> to vector<16xf32>
    %57 = vector.shape_cast %56 : vector<16xf32> to vector<16x1xf32>
    %58 = tpu.reciprocal %57 {approx = true} : vector<16x1xf32> -> vector<16x1xf32>
    %59 = vector.broadcast %58 : vector<16x1xf32> to vector<16x16xf32>
    %60 = arith.mulf %55, %59 : vector<16x16xf32>
    %61 = arith.truncf %60 : vector<16x16xf32> to vector<16x16xbf16>
    %cst_20 = arith.constant dense<0.000000e+00> : vector<16x128xf32>
    %62 = tpu.matmul %61, %50, %cst_20 {dimension_numbers = #tpu.dot_dimension_numbers<[1], [0], [0], [1], [0, 0, 1, 1], [], []>} : vector<16x16xbf16>, vector<16x128xbf16>, vector<16x128xf32> -> vector<16x128xf32>
    %cst_21 = arith.constant dense<0xFF800000> : vector<16xf32>
    %63 = vector.multi_reduction <maximumf>, %49, %cst_21 [0] : vector<16x16xf32> to vector<16xf32>
    %64 = vector.shape_cast %63 : vector<16xf32> to vector<1x16xf32>
    %65 = vector.broadcast %64 : vector<1x16xf32> to vector<16x16xf32>
    %66 = arith.subf %49, %65 : vector<16x16xf32>
    %67 = math.exp %66 : vector<16x16xf32>
    %cst_22 = arith.constant dense<0.000000e+00> : vector<16xf32>
    %68 = vector.multi_reduction <add>, %67, %cst_22 [0] : vector<16x16xf32> to vector<16xf32>
    %69 = vector.shape_cast %68 : vector<16xf32> to vector<1x16xf32>
    %70 = tpu.reciprocal %69 {approx = true} : vector<1x16xf32> -> vector<1x16xf32>
    %71 = vector.broadcast %70 : vector<1x16xf32> to vector<16x16xf32>
    %72 = arith.mulf %67, %71 : vector<16x16xf32>
    %73 = arith.truncf %72 : vector<16x16xf32> to vector<16x16xbf16>
    %74 = arith.truncf %62 : vector<16x128xf32> to vector<16x128xbf16>
    %cst_23 = arith.constant dense<0.000000e+00> : vector<16x128xf32>
    %75 = tpu.matmul %73, %74, %cst_23 {dimension_numbers = #tpu.dot_dimension_numbers<[0], [0], [1], [1], [0, 1, 1, 1], [], []>} : vector<16x16xbf16>, vector<16x128xbf16>, vector<16x128xf32> -> vector<16x128xf32>
    %76 = arith.addf %75, %43 : vector<16x128xf32>
    %77 = arith.truncf %76 : vector<16x128xf32> to vector<16x128xbf16>
    %78 = arith.index_cast %c1_i32 : i32 to index
    %c0_24 = arith.constant 0 : index
    %c0_25 = arith.constant 0 : index
    %79 = vector.load %arg6[%78, %c0_24, %c0_25] : memref<2x16x128xbf16, #tpu.memory_space<vmem>>, vector<1x16x128xbf16>
    %80 = vector.shape_cast %79 : vector<1x16x128xbf16> to vector<16x128xbf16>
    %81 = vector.shape_cast %77 : vector<16x128xbf16> to vector<1x16x128xbf16>
    tpu.vector_store %arg6[%78, %c0_24, %c0_25], %81 {strides = array<i32>} : memref<2x16x128xbf16, #tpu.memory_space<vmem>>, vector<1x16x128xbf16>,
    %c2_i32 = arith.constant 2 : i32
    %c0_26 = arith.constant 0 : index
    %c0_27 = arith.constant 0 : index
    %c0_28 = arith.constant 0 : index
    %82 = vector.load %arg6[%c0_26, %c0_27, %c0_28] : memref<2x16x128xbf16, #tpu.memory_space<vmem>>, vector<2x16x128xbf16>
    %83 = vector.shape_cast %82 : vector<2x16x128xbf16> to vector<32x128xbf16>
    %c0_29 = arith.constant 0 : index
    %c0_30 = arith.constant 0 : index
    %84 = vector.load %arg3[%c0_29, %c0_30] : memref<128x128xbf16, #tpu.memory_space<vmem>>, vector<128x128xbf16>
    %cst_31 = arith.constant dense<0.000000e+00> : vector<32x128xf32>
    %85 = tpu.matmul %83, %84, %cst_31 {dimension_numbers = #tpu.dot_dimension_numbers<[1], [0], [0], [1], [0, 0, 1, 1], [], []>} : vector<32x128xbf16>, vector<128x128xbf16>, vector<32x128xf32> -> vector<32x128xf32>
    %c0_32 = arith.constant 0 : index
    %c0_33 = arith.constant 0 : index
    %86 = vector.load %arg4[%c0_32, %c0_33] : memref<1x128xf32, #tpu.memory_space<vmem>>, vector<1x128xf32>
    %87 = vector.broadcast %86 : vector<1x128xf32> to vector<32x128xf32>
    %88 = arith.addf %85, %87 : vector<32x128xf32>
    %89 = vector.shape_cast %88 : vector<32x128xf32> to vector<2x16x128xf32>
    %c0_34 = arith.constant 0 : index
    %c0_35 = arith.constant 0 : index
    %c0_36 = arith.constant 0 : index
    %90 = vector.load %arg5[%c0_34, %c0_35, %c0_36] : memref<2x16x128xf32, #tpu.memory_space<vmem>>, vector<2x16x128xf32>
    tpu.vector_store %arg5[%c0_34, %c0_35, %c0_36], %89 {strides = array<i32>} : memref<2x16x128xf32, #tpu.memory_space<vmem>>, vector<2x16x128xf32>,
    return
  }
  func.func @transform_0(%arg0: i32) -> (i32, i32, i32) {
    %c0_i32 = arith.constant 0 : i32
    %c0_i32_0 = arith.constant 0 : i32
    %c0_i32_1 = arith.constant 0 : i32
    return %arg0, %c0_i32, %c0_i32_0 : i32, i32, i32
  }
  func.func @transform_1(%arg0: i32) -> (i32, i32, i32) {
    %c0_i32 = arith.constant 0 : i32
    %c0_i32_0 = arith.constant 0 : i32
    %c0_i32_1 = arith.constant 0 : i32
    return %arg0, %c0_i32, %c0_i32_0 : i32, i32, i32
  }
  func.func @transform_2(%arg0: i32) -> (i32, i32) {
    %c0_i32 = arith.constant 0 : i32
    %c0_i32_0 = arith.constant 0 : i32
    %c0_i32_1 = arith.constant 0 : i32
    return %c0_i32, %c0_i32_0 : i32, i32
  }
  func.func @transform_3(%arg0: i32) -> (i32, i32) {
    %c0_i32 = arith.constant 0 : i32
    %c0_i32_0 = arith.constant 0 : i32
    %c0_i32_1 = arith.constant 0 : i32
    return %c0_i32, %c0_i32_0 : i32, i32
  }
  func.func @transform_4(%arg0: i32) -> (i32, i32, i32) {
    %c0_i32 = arith.constant 0 : i32
    %c0_i32_0 = arith.constant 0 : i32
    %c0_i32_1 = arith.constant 0 : i32
    return %arg0, %c0_i32, %c0_i32_0 : i32, i32, i32
  }
}

</mosaic_0001>

<llo_original>
// kernel: tpu_custom_call.1
$region0: #{tpu_custom_call.1}
  #allocation0 [shape = 'u32[]', space=smem, size = 0x4, offset = 0x4, fixed_abs, tag = 'smem constant byte address 0x4 - core index']
  #allocation1 [shape = 'u32[144,128]{1,0:T(1,128)}', space=vmem, size = 0x12000, scoped, tag = 'internal scratch']
  #allocation2 [shape = 'bf16[2,16,128]{2,1,0:T(8,128)(2,1)}', space=vmem, size = 0x2000, scoped, tag = 'scratch operand']
  %s0 = inlined_call_operand.hbm [shape: f32[2,16,128], index: 0, kind: input, shape index: {}]
  %s1 = inlined_call_operand.hbm [shape: f32[2,16,128], index: 1, kind: input, shape index: {}]
  %s2 = inlined_call_operand.hbm [shape: bf16[128,128], index: 2, kind: input, shape index: {}]
  %s3 = inlined_call_operand.vmem [shape: f32[1,128], index: 3, kind: input, shape index: {}]
  %s4 = inlined_call_operand.hbm [shape: f32[2,16,128], index: 4, kind: output, shape index: {}]
  %s5 = sld [smem:[#allocation0]]
  $region38: #{tpu_custom_call.1} parent=0
    _
  %s7 = ssub.s32 1, %s5
  %s8 = scalar_select 0, %s7, %s5
  $region1: #{tpu_custom_call.1} parent=0
    #allocation3 [shape = 'u8[16384]{0}', space=vmem, size = 0x4000, scoped, tag = 'input window, operand 0, single buffered']
    #allocation4 [shape = 's32[1]{0}', space=sflag, size = 0x4, scoped, tag = 'scoped memory for tpu_custom_call.1']
    #allocation5 [shape = 's32[1]{0}', space=sflag, size = 0x4, scoped, tag = 'scoped memory for tpu_custom_call.1']
    #allocation6 [shape = 'u8[16384]{0}', space=vmem, size = 0x4000, scoped, tag = 'input window, operand 1, single buffered']
    #allocation7 [shape = 's32[1]{0}', space=sflag, size = 0x4, scoped, tag = 'scoped memory for tpu_custom_call.1']
    #allocation8 [shape = 'u8[32768]{0}', space=vmem, size = 0x8000, scoped, tag = 'input window, operand 2, single buffered']
    #allocation9 [shape = 'u8[16384]{0}', space=vmem, size = 0x4000, scoped, tag = 'output window, operand 0, single buffered']
    %9 = vsyncpa [#allocation4], 0
    %10 = vsyncpa [#allocation7], 0
    %11 = vsyncpa [#allocation5], 0
    // Predicated region
    $region2: #{tpu_custom_call.1} parent=1 // pred_check
      _
    $region3: #{tpu_custom_call.1} parent=1 // pred_check_branch
      %13 = sbr.rel (0) target = $region5
    $region4: #{tpu_custom_call.1} parent=1 // pred_region
      %s15 = ssub.s32 512, 512
      %16 = vsyncadd [#allocation4], %s15
      %s17 = sshll.u32 [#allocation3], 4
      %s18 = int_to_ptr.vmem [resolvable:$true] %s17
      %23 = dma.hbm_to_vmem [thread:$0]  %s0, 512, %s18, [#allocation4], 128, 128, 8
    $region5: #{tpu_custom_call.1} parent=1 // pred_fallthru
      _
    // Predicated region
    $region6: #{tpu_custom_call.1} parent=1 // pred_check
      _
    $region7: #{tpu_custom_call.1} parent=1 // pred_check_branch
      %25 = sbr.rel (0) target = $region9
    $region8: #{tpu_custom_call.1} parent=1 // pred_region
      %s27 = ssub.s32 512, 512
      %28 = vsyncadd [#allocation7], %s27
      %s29 = sshll.u32 [#allocation6], 4
      %s30 = int_to_ptr.vmem [resolvable:$true] %s29
      %35 = dma.hbm_to_vmem [thread:$0]  %s1, 512, %s30, [#allocation7], 128, 128, 8
    $region9: #{tpu_custom_call.1} parent=1 // pred_fallthru
      _
    // Predicated region
    $region10: #{tpu_custom_call.1} parent=1 // pred_check
      _
    $region11: #{tpu_custom_call.1} parent=1 // pred_check_branch
      %37 = sbr.rel (0) target = $region13
    $region12: #{tpu_custom_call.1} parent=1 // pred_region
      %s39 = ssub.s32 1024, 1024
      %40 = vsyncadd [#allocation7], %s39
      %s41 = sshll.u32 [#allocation8], 4
      %s42 = int_to_ptr.vmem [resolvable:$true] %s41
      %47 = dma.hbm_to_vmem [thread:$0]  %s2, 1024, %s42, [#allocation7], 64, 64, 4
    $region13: #{tpu_custom_call.1} parent=1 // pred_fallthru
      _
    // Predicated region
    $region14: #{tpu_custom_call.1} parent=1 // pred_check
      _
    $region15: #{tpu_custom_call.1} parent=1 // pred_check_branch
      %49 = sbr.rel (0) target = $region17
    $region16: #{tpu_custom_call.1} parent=1 // pred_region
      _
    $region17: #{tpu_custom_call.1} parent=1 // pred_fallthru
      _
    // Predicated region
    $region18: #{tpu_custom_call.1} parent=1 // pred_check
      _
    $region19: #{tpu_custom_call.1} parent=1 // pred_check_branch
      %51 = sbr.rel (0) target = $region21
    $region20: #{tpu_custom_call.1} parent=1 // pred_region
      %52 = dma.done [#allocation4], 512
    $region21: #{tpu_custom_call.1} parent=1 // pred_fallthru
      _
    // Predicated region
    $region22: #{tpu_custom_call.1} parent=1 // pred_check
      _
    $region23: #{tpu_custom_call.1} parent=1 // pred_check_branch
      %54 = sbr.rel (0) target = $region25
    $region24: #{tpu_custom_call.1} parent=1 // pred_region
      %55 = dma.done [#allocation7], 512
    $region25: #{tpu_custom_call.1} parent=1 // pred_fallthru
      _
    // Predicated region
    $region26: #{tpu_custom_call.1} parent=1 // pred_check
      _
    $region27: #{tpu_custom_call.1} parent=1 // pred_check_branch
      %57 = sbr.rel (0) target = $region29
    $region28: #{tpu_custom_call.1} parent=1 // pred_region
      %58 = dma.done [#allocation7], 1024
    $region29: #{tpu_custom_call.1} parent=1 // pred_fallthru
      _
    %v60 = vld [vmem:[#allocation3] sm:$0xff]
    %v61 = vld [vmem:[#allocation3 + $0x8] sm:$0xff]
    %v62 = vld [vmem:[#allocation6] sm:$0xff]
    %v63 = vld [vmem:[#allocation6 + $0x8] sm:$0xff]
    %64 = vmatprep.subr.mxu0 0.0
    %65 = vmatpush1.xpose.msra.mxu0 0.0
    %66 = vmatprep.subr.mxu0 0.0
    %67 = vmatpush1.xpose.msra.mxu0 0.0
    %68 = vmatprep.subr.mxu0 0.0
    %69 = vmatpush1.xpose.msra.mxu0 0.0
    %70 = vmatprep.subr.mxu0 0.0
    %71 = vmatpush1.xpose.msra.mxu0 0.0
    %72 = vmatprep.subr.mxu0 0.0
    %73 = vmatpush1.xpose.msra.mxu0 0.0
    %74 = vmatprep.subr.mxu0 0.0
    %75 = vmatpush1.xpose.msra.mxu0 0.0
    %76 = vmatprep.subr.mxu0 0.0
    %77 = vmatpush1.xpose.msra.mxu0 0.0
    %78 = vmatprep.subr.mxu0 0.0
    %79 = vmatpush1.xpose.msra.mxu0 0.0
    %80 = vmatprep.subr.mxu0 0.0
    %81 = vmatpush1.xpose.msra.mxu0 0.0
    %82 = vmatprep.subr.mxu0 0.0
    %83 = vmatpush1.xpose.msra.mxu0 0.0
    %84 = vmatprep.subr.mxu0 0.0
    %85 = vmatpush1.xpose.msra.mxu0 0.0
    %86 = vmatprep.subr.mxu0 0.0
    %87 = vmatpush1.xpose.msra.mxu0 0.0
    %88 = vmatprep.subr.mxu0 0.0
    %89 = vmatpush1.xpose.msra.mxu0 0.0
    %90 = vmatprep.subr.mxu0 0.0
    %91 = vmatpush1.xpose.msra.mxu0 0.0
    %92 = vmatprep.subr.mxu0 0.0
    %93 = vmatpush1.xpose.msra.mxu0 %v61
    %94 = vmatprep.subr.mxu0 0.0
    %95 = vmatpush1.xpose.msra.mxu0 %v60
    %96 = vmatprep.subr.mxu0 0.0
    %97 = vmatpush2.xpose.msra.mxu0 0.0
    %98 = vmatprep.subr.mxu0 0.0
    %99 = vmatpush2.xpose.msra.mxu0 0.0
    %100 = vmatprep.subr.mxu0 0.0
    %101 = vmatpush2.xpose.msra.mxu0 0.0
    %102 = vmatprep.subr.mxu0 0.0
    %103 = vmatpush2.xpose.msra.mxu0 0.0
    %104 = vmatprep.subr.mxu0 0.0
    %105 = vmatpush2.xpose.msra.mxu0 0.0
    %106 = vmatprep.subr.mxu0 0.0
    %107 = vmatpush2.xpose.msra.mxu0 0.0
    %108 = vmatprep.subr.mxu0 0.0
    %109 = vmatpush2.xpose.msra.mxu0 0.0
    %110 = vmatprep.subr.mxu0 0.0
    %111 = vmatpush2.xpose.msra.mxu0 0.0
    %112 = vmatprep.subr.mxu0 0.0
    %113 = vmatpush2.xpose.msra.mxu0 0.0
    %114 = vmatprep.subr.mxu0 0.0
    %115 = vmatpush2.xpose.msra.mxu0 0.0
    %116 = vmatprep.subr.mxu0 0.0
    %117 = vmatpush2.xpose.msra.mxu0 0.0
    %118 = vmatprep.subr.mxu0 0.0
    %119 = vmatpush2.xpose.msra.mxu0 0.0
    %120 = vmatprep.subr.mxu0 0.0
    %121 = vmatpush2.xpose.msra.mxu0 0.0
    %122 = vmatprep.subr.mxu0 0.0
    %123 = vmatpush2.xpose.msra.mxu0 0.0
    %124 = vmatprep.subr.mxu0 0.0
    %125 = vmatpush2.xpose.msra.mxu0 0.0
    %126 = vmatprep.subr.mxu0 0.0
    %127 = vmatpush2.xpose.msra.mxu0 0.0
    %128 = vmatprep.mubr.f32.mxu0 0.0
    %129 = vmatmul.mubr.f32.gmra.mxu0 %v62
    %v130 = vpop.f32.mrf.mxu0
    %v131 = vadd.f32 0.0, %v130
    %v132 = vpop.f32.mrf.mxu0
    %133 = vmatprep.mubr.f32.mxu0 0.0
    %134 = vmatmul.mubr.f32.gmra.mxu0 %v63
    %v135 = vpop.f32.mrf.mxu0
    %v136 = vadd.f32 0.0, %v135
    %v137 = vpop.f32.mrf.mxu0
    %138 = vdwg.mxu0
    %v139 = vmul.f32 %v131, 0.088388346
    %v140 = vmul.f32 %v136, 0.088388346
    %v141 = vpack.c.bf16 %v61, %v60
    %vm142 = vcmask 130048
    %v143 = vsel %vm142, %v139, -inf
    %144 = vmax.xlane.f32.xlu0 %v143
    %v145 = vpop.xlane.xlu0 %144
    %v146 = vsel %vm142, %v140, -inf
    %147 = vmax.xlane.f32.xlu0 %v146
    %v148 = vpop.xlane.xlu0 %147
    %v149 = vsub.f32 %v139, %v145
    %v150 = vsub.f32 %v140, %v148
    %v151 = vmul.f32 %v149, 1.442695
    %v152 = vpow.pop %v151
    %v153 = vmul.f32 %v150, 1.442695
    %v154 = vpow.pop %v153
    %v155 = vsel %vm142, %v152, 0.0
    %156 = vadd.xlane.f32.xlu0 %v155
    %v157 = vpop.xlane.xlu0 %156
    %v158 = vsel %vm142, %v154, 0.0
    %159 = vadd.xlane.f32.xlu0 %v158
    %v160 = vpop.xlane.xlu0 %159
    %v161 = vrcp.pop %v157
    %v162 = vrcp.pop %v160
    %v163 = vmul.f32 %v152, %v161
    %v164 = vmul.f32 %v154, %v162
    %v165 = vpack.c.bf16 %v164, %v163
    %v167 = vsel %vm142, %v165, 0
    %169 = vmatprep.subr.bf16.mxu0 0
    %170 = vmatpush1.bf16.msra.mxu0 0
    %171 = vmatprep.subr.bf16.mxu0 0
    %172 = vmatpush1.bf16.msra.mxu0 0
    %173 = vmatprep.subr.bf16.mxu0 0
    %174 = vmatpush1.bf16.msra.mxu0 0
    %175 = vmatprep.subr.bf16.mxu0 0
    %176 = vmatpush1.bf16.msra.mxu0 0
    %177 = vmatprep.subr.bf16.mxu0 0
    %178 = vmatpush1.bf16.msra.mxu0 0
    %179 = vmatprep.subr.bf16.mxu0 0
    %180 = vmatpush1.bf16.msra.mxu0 0
    %181 = vmatprep.subr.bf16.mxu0 0
    %182 = vmatpush1.bf16.msra.mxu0 0
    %183 = vmatprep.subr.bf16.mxu0 0
    %184 = vmatpush1.bf16.msra.mxu0 %v141
    %185 = vmatprep.subr.bf16.mxu0 0
    %186 = vmatpush2.bf16.msra.mxu0 0
    %187 = vmatprep.subr.bf16.mxu0 0
    %188 = vmatpush2.bf16.msra.mxu0 0
    %189 = vmatprep.subr.bf16.mxu0 0
    %190 = vmatpush2.bf16.msra.mxu0 0
    %191 = vmatprep.subr.bf16.mxu0 0
    %192 = vmatpush2.bf16.msra.mxu0 0
    %193 = vmatprep.subr.bf16.mxu0 0
    %194 = vmatpush2.bf16.msra.mxu0 0
    %195 = vmatprep.subr.bf16.mxu0 0
    %196 = vmatpush2.bf16.msra.mxu0 0
    %197 = vmatprep.subr.bf16.mxu0 0
    %198 = vmatpush2.bf16.msra.mxu0 0
    %199 = vmatprep.subr.bf16.mxu0 0
    %200 = vmatpush2.bf16.msra.mxu0 0
    %201 = vmatprep.mubr.bf16.mxu0 0
    %202 = vmatmul.mubr.bf16.gmra.mxu0 %v167
    %v203 = vpop.f32.mrf.mxu0
    %v204 = vadd.f32 0.0, %v203
    %v205 = vpop.f32.mrf.mxu0
    %v206 = vpop.f32.mrf.mxu0
    %v207 = vadd.f32 0.0, %v206
    %v208 = vpop.f32.mrf.mxu0
    %209 = vdwg.mxu0
    %v210 = vmax.f32 %v143, %v146
    %v211 = vrot.slane %v210, 4
    %v212 = vmax.f32 %v210, %v211
    %v213 = vrot.slane %v212, 2
    %v214 = vmax.f32 %v212, %v213
    %v215 = vrot.slane %v214, 1
    %v216 = vmax.f32 %v214, %v215
    %v217 = vsub.f32 %v139, %v216
    %v218 = vsub.f32 %v140, %v216
    %v219 = vmul.f32 %v217, 1.442695
    %v220 = vpow.pop %v219
    %v221 = vmul.f32 %v218, 1.442695
    %v222 = vpow.pop %v221
    %v223 = vsel %vm142, %v220, 0.0
    %v224 = vsel %vm142, %v222, 0.0
    %v225 = vadd.f32 %v223, %v224
    %v226 = vrot.slane %v225, 4
    %v227 = vadd.f32 %v225, %v226
    %v228 = vrot.slane %v227, 2
    %v229 = vadd.f32 %v227, %v228
    %v230 = vrot.slane %v229, 1
    %v231 = vadd.f32 %v229, %v230
    %v232 = vrcp.pop %v231
    %v233 = vmul.f32 %v220, %v232
    %v234 = vmul.f32 %v222, %v232
    %v235 = vpack.c.bf16 %v234, %v233
    %v236 = vpack.c.bf16 %v207, %v204
    %237 = vxpose.xlu0.c.b16.start [1/8] %v235, 128
    %238 = vxpose.xlu0.c.b16.cont [2/8] 0, 128
    %239 = vxpose.xlu0.c.b16.cont [3/8] 0, 128
    %240 = vxpose.xlu0.c.b16.cont [4/8] 0, 128
    %241 = vxpose.xlu0.c.b16.cont [5/8] 0, 128
    %242 = vxpose.xlu0.c.b16.cont [6/8] 0, 128
    %243 = vxpose.xlu0.c.b16.cont [7/8] 0, 128
    %244 = vxpose.xlu0.c.b16.end [8/8] 0, 128
    %v245 = vpop.trf.xlu0
    %v246 = vpop.trf.xlu0
    %v247 = vpop.trf.xlu0
    %v248 = vpop.trf.xlu0
    %v249 = vpop.trf.xlu0
    %v250 = vpop.trf.xlu0
    %v251 = vpop.trf.xlu0
    %v252 = vpop.trf.xlu0
    %v254 = vsel %vm142, %v245, 0
    %256 = vmatprep.subr.bf16.mxu0 0
    %257 = vmatpush1.bf16.msra.mxu0 0
    %258 = vmatprep.subr.bf16.mxu0 0
    %259 = vmatpush1.bf16.msra.mxu0 0
    %260 = vmatprep.subr.bf16.mxu0 0
    %261 = vmatpush1.bf16.msra.mxu0 0
    %262 = vmatprep.subr.bf16.mxu0 0
    %263 = vmatpush1.bf16.msra.mxu0 0
    %264 = vmatprep.subr.bf16.mxu0 0
    %265 = vmatpush1.bf16.msra.mxu0 0
    %266 = vmatprep.subr.bf16.mxu0 0
    %267 = vmatpush1.bf16.msra.mxu0 0
    %268 = vmatprep.subr.bf16.mxu0 0
    %269 = vmatpush1.bf16.msra.mxu0 0
    %270 = vmatprep.subr.bf16.mxu0 0
    %271 = vmatpush1.bf16.msra.mxu0 %v236
    %272 = vmatprep.subr.bf16.mxu0 0
    %273 = vmatpush2.bf16.msra.mxu0 0
    %274 = vmatprep.subr.bf16.mxu0 0
    %275 = vmatpush2.bf16.msra.mxu0 0
    %276 = vmatprep.subr.bf16.mxu0 0
    %277 = vmatpush2.bf16.msra.mxu0 0
    %278 = vmatprep.subr.bf16.mxu0 0
    %279 = vmatpush2.bf16.msra.mxu0 0
    %280 = vmatprep.subr.bf16.mxu0 0
    %281 = vmatpush2.bf16.msra.mxu0 0
    %282 = vmatprep.subr.bf16.mxu0 0
    %283 = vmatpush2.bf16.msra.mxu0 0
    %284 = vmatprep.subr.bf16.mxu0 0
    %285 = vmatpush2.bf16.msra.mxu0 0
    %286 = vmatprep.subr.bf16.mxu0 0
    %287 = vmatpush2.bf16.msra.mxu0 0
    %288 = vmatprep.mubr.bf16.mxu0 0
    %289 = vmatmul.mubr.bf16.gmra.mxu0 %v254
    %v290 = vpop.f32.mrf.mxu0
    %v291 = vadd.f32 %v60, %v290
    %v292 = vpop.f32.mrf.mxu0
    %v293 = vpop.f32.mrf.mxu0
    %v294 = vadd.f32 %v61, %v293
    %v295 = vpop.f32.mrf.mxu0
    %296 = vdwg.mxu0
    %v297 = vpack.c.bf16 %v294, %v291
    %v299 = vunpack.c.l.b16 %v297
    %v300 = vunpack.c.h.b16 %v297
    %v301 = vpack.c.b16 %v299, %v299
    %v302 = vpack.c.b16 %v300, %v300
    %305 = vst [vmem:[#allocation2] sm:$0xf] %v301
    %306 = vst [vmem:[#allocation2 + $0x4] sm:$0xf] %v302
    %s307 = scalar_lea.vmem [#allocation3], 16
    %v308 = vld [vmem:[%s307] sm:$0xff]
    %v309 = vld [vmem:[%s307 + $0x8] sm:$0xff]
    %s310 = scalar_lea.vmem [#allocation6], 16
    %v311 = vld [vmem:[%s310] sm:$0xff]
    %v312 = vld [vmem:[%s310 + $0x8] sm:$0xff]
    %313 = vmatprep.subr.mxu0 0.0
    %314 = vmatpush1.xpose.msra.mxu0 0.0
    %315 = vmatprep.subr.mxu0 0.0
    %316 = vmatpush1.xpose.msra.mxu0 0.0
    %317 = vmatprep.subr.mxu0 0.0
    %318 = vmatpush1.xpose.msra.mxu0 0.0
    %319 = vmatprep.subr.mxu0 0.0
    %320 = vmatpush1.xpose.msra.mxu0 0.0
    %321 = vmatprep.subr.mxu0 0.0
    %322 = vmatpush1.xpose.msra.mxu0 0.0
    %323 = vmatprep.subr.mxu0 0.0
    %324 = vmatpush1.xpose.msra.mxu0 0.0
    %325 = vmatprep.subr.mxu0 0.0
    %326 = vmatpush1.xpose.msra.mxu0 0.0
    %327 = vmatprep.subr.mxu0 0.0
    %328 = vmatpush1.xpose.msra.mxu0 0.0
    %329 = vmatprep.subr.mxu0 0.0
    %330 = vmatpush1.xpose.msra.mxu0 0.0
    %331 = vmatprep.subr.mxu0 0.0
    %332 = vmatpush1.xpose.msra.mxu0 0.0
    %333 = vmatprep.subr.mxu0 0.0
    %334 = vmatpush1.xpose.msra.mxu0 0.0
    %335 = vmatprep.subr.mxu0 0.0
    %336 = vmatpush1.xpose.msra.mxu0 0.0
    %337 = vmatprep.subr.mxu0 0.0
    %338 = vmatpush1.xpose.msra.mxu0 0.0
    %339 = vmatprep.subr.mxu0 0.0
    %340 = vmatpush1.xpose.msra.mxu0 0.0
    %341 = vmatprep.subr.mxu0 0.0
    %342 = vmatpush1.xpose.msra.mxu0 %v309
    %343 = vmatprep.subr.mxu0 0.0
    %344 = vmatpush1.xpose.msra.mxu0 %v308
    %345 = vmatprep.subr.mxu0 0.0
    %346 = vmatpush2.xpose.msra.mxu0 0.0
    %347 = vmatprep.subr.mxu0 0.0
    %348 = vmatpush2.xpose.msra.mxu0 0.0
    %349 = vmatprep.subr.mxu0 0.0
    %350 = vmatpush2.xpose.msra.mxu0 0.0
    %351 = vmatprep.subr.mxu0 0.0
    %352 = vmatpush2.xpose.msra.mxu0 0.0
    %353 = vmatprep.subr.mxu0 0.0
    %354 = vmatpush2.xpose.msra.mxu0 0.0
    %355 = vmatprep.subr.mxu0 0.0
    %356 = vmatpush2.xpose.msra.mxu0 0.0
    %357 = vmatprep.subr.mxu0 0.0
    %358 = vmatpush2.xpose.msra.mxu0 0.0
    %359 = vmatprep.subr.mxu0 0.0
    %360 = vmatpush2.xpose.msra.mxu0 0.0
    %361 = vmatprep.subr.mxu0 0.0
    %362 = vmatpush2.xpose.msra.mxu0 0.0
    %363 = vmatprep.subr.mxu0 0.0
    %364 = vmatpush2.xpose.msra.mxu0 0.0
    %365 = vmatprep.subr.mxu0 0.0
    %366 = vmatpush2.xpose.msra.mxu0 0.0
    %367 = vmatprep.subr.mxu0 0.0
    %368 = vmatpush2.xpose.msra.mxu0 0.0
    %369 = vmatprep.subr.mxu0 0.0
    %370 = vmatpush2.xpose.msra.mxu0 0.0
    %371 = vmatprep.subr.mxu0 0.0
    %372 = vmatpush2.xpose.msra.mxu0 0.0
    %373 = vmatprep.subr.mxu0 0.0
    %374 = vmatpush2.xpose.msra.mxu0 0.0
    %375 = vmatprep.subr.mxu0 0.0
    %376 = vmatpush2.xpose.msra.mxu0 0.0
    %377 = vmatprep.mubr.f32.mxu0 0.0
    %378 = vmatmul.mubr.f32.gmra.mxu0 %v311
    %v379 = vpop.f32.mrf.mxu0
    %v380 = vadd.f32 0.0, %v379
    %v381 = vpop.f32.mrf.mxu0
    %382 = vmatprep.mubr.f32.mxu0 0.0
    %383 = vmatmul.mubr.f32.gmra.mxu0 %v312
    %v384 = vpop.f32.mrf.mxu0
    %v385 = vadd.f32 0.0, %v384
    %v386 = vpop.f32.mrf.mxu0
    %387 = vdwg.mxu0
    %v388 = vmul.f32 %v380, 0.088388346
    %v389 = vmul.f32 %v385, 0.088388346
    %v390 = vpack.c.bf16 %v309, %v308
    %v391 = vsel %vm142, %v388, -inf
    %392 = vmax.xlane.f32.xlu0 %v391
    %v393 = vpop.xlane.xlu0 %392
    %v394 = vsel %vm142, %v389, -inf
    %395 = vmax.xlane.f32.xlu0 %v394
    %v396 = vpop.xlane.xlu0 %395
    %v397 = vsub.f32 %v388, %v393
    %v398 = vsub.f32 %v389, %v396
    %v399 = vmul.f32 %v397, 1.442695
    %v400 = vpow.pop %v399
    %v401 = vmul.f32 %v398, 1.442695
    %v402 = vpow.pop %v401
    %v403 = vsel %vm142, %v400, 0.0
    %404 = vadd.xlane.f32.xlu0 %v403
    %v405 = vpop.xlane.xlu0 %404
    %v406 = vsel %vm142, %v402, 0.0
    %407 = vadd.xlane.f32.xlu0 %v406
    %v408 = vpop.xlane.xlu0 %407
    %v409 = vrcp.pop %v405
    %v410 = vrcp.pop %v408
    %v411 = vmul.f32 %v400, %v409
    %v412 = vmul.f32 %v402, %v410
    %v413 = vpack.c.bf16 %v412, %v411
    %v415 = vsel %vm142, %v413, 0
    %417 = vmatprep.subr.bf16.mxu0 0
    %418 = vmatpush1.bf16.msra.mxu0 0
    %419 = vmatprep.subr.bf16.mxu0 0
    %420 = vmatpush1.bf16.msra.mxu0 0
    %421 = vmatprep.subr.bf16.mxu0 0
    %422 = vmatpush1.bf16.msra.mxu0 0
    %423 = vmatprep.subr.bf16.mxu0 0
    %424 = vmatpush1.bf16.msra.mxu0 0
    %425 = vmatprep.subr.bf16.mxu0 0
    %426 = vmatpush1.bf16.msra.mxu0 0
    %427 = vmatprep.subr.bf16.mxu0 0
    %428 = vmatpush1.bf16.msra.mxu0 0
    %429 = vmatprep.subr.bf16.mxu0 0
    %430 = vmatpush1.bf16.msra.mxu0 0
    %431 = vmatprep.subr.bf16.mxu0 0
    %432 = vmatpush1.bf16.msra.mxu0 %v390
    %433 = vmatprep.subr.bf16.mxu0 0
    %434 = vmatpush2.bf16.msra.mxu0 0
    %435 = vmatprep.subr.bf16.mxu0 0
    %436 = vmatpush2.bf16.msra.mxu0 0
    %437 = vmatprep.subr.bf16.mxu0 0
    %438 = vmatpush2.bf16.msra.mxu0 0
    %439 = vmatprep.subr.bf16.mxu0 0
    %440 = vmatpush2.bf16.msra.mxu0 0
    %441 = vmatprep.subr.bf16.mxu0 0
    %442 = vmatpush2.bf16.msra.mxu0 0
    %443 = vmatprep.subr.bf16.mxu0 0
    %444 = vmatpush2.bf16.msra.mxu0 0
    %445 = vmatprep.subr.bf16.mxu0 0
    %446 = vmatpush2.bf16.msra.mxu0 0
    %447 = vmatprep.subr.bf16.mxu0 0
    %448 = vmatpush2.bf16.msra.mxu0 0
    %449 = vmatprep.mubr.bf16.mxu0 0
    %450 = vmatmul.mubr.bf16.gmra.mxu0 %v415
    %v451 = vpop.f32.mrf.mxu0
    %v452 = vadd.f32 0.0, %v451
    %v453 = vpop.f32.mrf.mxu0
    %v454 = vpop.f32.mrf.mxu0
    %v455 = vadd.f32 0.0, %v454
    %v456 = vpop.f32.mrf.mxu0
    %457 = vdwg.mxu0
    %v458 = vmax.f32 %v391, %v394
    %v459 = vrot.slane %v458, 4
    %v460 = vmax.f32 %v458, %v459
    %v461 = vrot.slane %v460, 2
    %v462 = vmax.f32 %v460, %v461
    %v463 = vrot.slane %v462, 1
    %v464 = vmax.f32 %v462, %v463
    %v465 = vsub.f32 %v388, %v464
    %v466 = vsub.f32 %v389, %v464
    %v467 = vmul.f32 %v465, 1.442695
    %v468 = vpow.pop %v467
    %v469 = vmul.f32 %v466, 1.442695
    %v470 = vpow.pop %v469
    %v471 = vsel %vm142, %v468, 0.0
    %v472 = vsel %vm142, %v470, 0.0
    %v473 = vadd.f32 %v471, %v472
    %v474 = vrot.slane %v473, 4
    %v475 = vadd.f32 %v473, %v474
    %v476 = vrot.slane %v475, 2
    %v477 = vadd.f32 %v475, %v476
    %v478 = vrot.slane %v477, 1
    %v479 = vadd.f32 %v477, %v478
    %v480 = vrcp.pop %v479
    %v481 = vmul.f32 %v468, %v480
    %v482 = vmul.f32 %v470, %v480
    %v483 = vpack.c.bf16 %v482, %v481
    %v484 = vpack.c.bf16 %v455, %v452
    %485 = vxpose.xlu0.c.b16.start [1/8] %v483, 128
    %486 = vxpose.xlu0.c.b16.cont [2/8] 0, 128
    %487 = vxpose.xlu0.c.b16.cont [3/8] 0, 128
    %488 = vxpose.xlu0.c.b16.cont [4/8] 0, 128
    %489 = vxpose.xlu0.c.b16.cont [5/8] 0, 128
    %490 = vxpose.xlu0.c.b16.cont [6/8] 0, 128
    %491 = vxpose.xlu0.c.b16.cont [7/8] 0, 128
    %492 = vxpose.xlu0.c.b16.end [8/8] 0, 128
    %v493 = vpop.trf.xlu0
    %v494 = vpop.trf.xlu0
    %v495 = vpop.trf.xlu0
    %v496 = vpop.trf.xlu0
    %v497 = vpop.trf.xlu0
    %v498 = vpop.trf.xlu0
    %v499 = vpop.trf.xlu0
    %v500 = vpop.trf.xlu0
    %v502 = vsel %vm142, %v493, 0
    %504 = vmatprep.subr.bf16.mxu0 0
    %505 = vmatpush1.bf16.msra.mxu0 0
    %506 = vmatprep.subr.bf16.mxu0 0
    %507 = vmatpush1.bf16.msra.mxu0 0
    %508 = vmatprep.subr.bf16.mxu0 0
    %509 = vmatpush1.bf16.msra.mxu0 0
    %510 = vmatprep.subr.bf16.mxu0 0
    %511 = vmatpush1.bf16.msra.mxu0 0
    %512 = vmatprep.subr.bf16.mxu0 0
    %513 = vmatpush1.bf16.msra.mxu0 0
    %514 = vmatprep.subr.bf16.mxu0 0
    %515 = vmatpush1.bf16.msra.mxu0 0
    %516 = vmatprep.subr.bf16.mxu0 0
    %517 = vmatpush1.bf16.msra.mxu0 0
    %518 = vmatprep.subr.bf16.mxu0 0
    %519 = vmatpush1.bf16.msra.mxu0 %v484
    %520 = vmatprep.subr.bf16.mxu0 0
    %521 = vmatpush2.bf16.msra.mxu0 0
    %522 = vmatprep.subr.bf16.mxu0 0
    %523 = vmatpush2.bf16.msra.mxu0 0
    %524 = vmatprep.subr.bf16.mxu0 0
    %525 = vmatpush2.bf16.msra.mxu0 0
    %526 = vmatprep.subr.bf16.mxu0 0
    %527 = vmatpush2.bf16.msra.mxu0 0
    %528 = vmatprep.subr.bf16.mxu0 0
    %529 = vmatpush2.bf16.msra.mxu0 0
    %530 = vmatprep.subr.bf16.mxu0 0
    %531 = vmatpush2.bf16.msra.mxu0 0
    %532 = vmatprep.subr.bf16.mxu0 0
    %533 = vmatpush2.bf16.msra.mxu0 0
    %534 = vmatprep.subr.bf16.mxu0 0
    %535 = vmatpush2.bf16.msra.mxu0 0
    %536 = vmatprep.mubr.bf16.mxu0 0
    %537 = vmatmul.mubr.bf16.gmra.mxu0 %v502
    %v538 = vpop.f32.mrf.mxu0
    %v539 = vadd.f32 %v308, %v538
    %v540 = vpop.f32.mrf.mxu0
    %v541 = vpop.f32.mrf.mxu0
    %v542 = vadd.f32 %v309, %v541
    %v543 = vpop.f32.mrf.mxu0
    %544 = vdwg.mxu0
    %v545 = vpack.c.bf16 %v542, %v539
    %v547 = vunpack.c.l.b16 %v545
    %v548 = vunpack.c.h.b16 %v545
    %v549 = vpack.c.b16 %v547, %v547
    %v550 = vpack.c.b16 %v548, %v548
    %s553 = scalar_lea.vmem [#allocation2], 8
    %554 = vst [vmem:[%s553] sm:$0xf] %v549
    %555 = vst [vmem:[%s553 + $0x4] sm:$0xf] %v550
    %v556 = vld [vmem:[#allocation2] sm:$0xf]
    %v557 = vld [vmem:[#allocation2 + $0x4] sm:$0xf]
    %v558 = vld [vmem:[#allocation2 + $0x8] sm:$0xf]
    %v559 = vld [vmem:[#allocation2 + $0xc] sm:$0xf]
    %v560 = vld [vmem:[#allocation8] sm:$0xf]
    %v561 = vld [vmem:[#allocation8 + $0x4] sm:$0xf]
    %v562 = vld [vmem:[#allocation8 + $0x8] sm:$0xf]
    %v563 = vld [vmem:[#allocation8 + $0xc] sm:$0xf]
    %v564 = vld [vmem:[#allocation8 + $0x10] sm:$0xf]
    %v565 = vld [vmem:[#allocation8 + $0x14] sm:$0xf]
    %v566 = vld [vmem:[#allocation8 + $0x18] sm:$0xf]
    %v567 = vld [vmem:[#allocation8 + $0x1c] sm:$0xf]
    %v568 = vld [vmem:[#allocation8 + $0x20] sm:$0xf]
    %v569 = vld [vmem:[#allocation8 + $0x24] sm:$0xf]
    %v570 = vld [vmem:[#allocation8 + $0x28] sm:$0xf]
    %v571 = vld [vmem:[#allocation8 + $0x2c] sm:$0xf]
    %v572 = vld [vmem:[#allocation8 + $0x30] sm:$0xf]
    %v573 = vld [vmem:[#allocation8 + $0x34] sm:$0xf]
    %v574 = vld [vmem:[#allocation8 + $0x38] sm:$0xf]
    %v575 = vld [vmem:[#allocation8 + $0x3c] sm:$0xf]
    %v576 = vld [vmem:[%s3] sm:$0x1]
    %v578 = vlaneseq
    %v579 = vshrl.u32 %v578, 7
    %v580 = vsub.s32 0, %v579
    %v581 = vrot.slane %v576, %v580
    %v587 = vunpack.c.l.b16 %v556
    %v588 = vunpack.c.l.b16 %v557
    %v589 = vunpack.c.l.b16 %v558
    %v590 = vunpack.c.l.b16 %v559
    %v591 = vpack.c.b16 %v588, %v587
    %v592 = vpack.c.b16 %v590, %v589
    %v611 = vunpack.c.l.b16 %v560
    %v612 = vunpack.c.l.b16 %v561
    %v613 = vunpack.c.l.b16 %v562
    %v614 = vunpack.c.l.b16 %v563
    %v615 = vunpack.c.l.b16 %v564
    %v616 = vunpack.c.l.b16 %v565
    %v617 = vunpack.c.l.b16 %v566
    %v618 = vunpack.c.l.b16 %v567
    %v619 = vunpack.c.l.b16 %v568
    %v620 = vunpack.c.l.b16 %v569
    %v621 = vunpack.c.l.b16 %v570
    %v622 = vunpack.c.l.b16 %v571
    %v623 = vunpack.c.l.b16 %v572
    %v624 = vunpack.c.l.b16 %v573
    %v625 = vunpack.c.l.b16 %v574
    %v626 = vunpack.c.l.b16 %v575
    %v627 = vpack.c.b16 %v612, %v611
    %v628 = vpack.c.b16 %v614, %v613
    %v629 = vpack.c.b16 %v616, %v615
    %v630 = vpack.c.b16 %v618, %v617
    %v631 = vpack.c.b16 %v620, %v619
    %v632 = vpack.c.b16 %v622, %v621
    %v633 = vpack.c.b16 %v624, %v623
    %v634 = vpack.c.b16 %v626, %v625
    %643 = vmatprep.subr.bf16.mxu0 0
    %644 = vmatpush1.bf16.msra.mxu0 %v634
    %645 = vmatprep.subr.bf16.mxu0 0
    %646 = vmatpush1.bf16.msra.mxu0 %v633
    %647 = vmatprep.subr.bf16.mxu0 0
    %648 = vmatpush1.bf16.msra.mxu0 %v632
    %649 = vmatprep.subr.bf16.mxu0 0
    %650 = vmatpush1.bf16.msra.mxu0 %v631
    %651 = vmatprep.subr.bf16.mxu0 0
    %652 = vmatpush1.bf16.msra.mxu0 %v630
    %653 = vmatprep.subr.bf16.mxu0 0
    %654 = vmatpush1.bf16.msra.mxu0 %v629
    %655 = vmatprep.subr.bf16.mxu0 0
    %656 = vmatpush1.bf16.msra.mxu0 %v628
    %657 = vmatprep.subr.bf16.mxu0 0
    %658 = vmatpush1.bf16.msra.mxu0 %v627
    %659 = vmatprep.subr.bf16.mxu0 0
    %660 = vmatpush2.bf16.msra.mxu0 0
    %661 = vmatprep.subr.bf16.mxu0 0
    %662 = vmatpush2.bf16.msra.mxu0 0
    %663 = vmatprep.subr.bf16.mxu0 0
    %664 = vmatpush2.bf16.msra.mxu0 0
    %665 = vmatprep.subr.bf16.mxu0 0
    %666 = vmatpush2.bf16.msra.mxu0 0
    %667 = vmatprep.subr.bf16.mxu0 0
    %668 = vmatpush2.bf16.msra.mxu0 0
    %669 = vmatprep.subr.bf16.mxu0 0
    %670 = vmatpush2.bf16.msra.mxu0 0
    %671 = vmatprep.subr.bf16.mxu0 0
    %672 = vmatpush2.bf16.msra.mxu0 0
    %673 = vmatprep.subr.bf16.mxu0 0
    %674 = vmatpush2.bf16.msra.mxu0 0
    %675 = vmatprep.mubr.bf16.mxu0 0
    %676 = vmatmul.mubr.bf16.gmra.mxu0 %v591
    %v677 = vpop.f32.mrf.mxu0
    %v678 = vadd.f32 %v581, %v677
    %v679 = vpop.f32.mrf.mxu0
    %v680 = vpop.f32.mrf.mxu0
    %v681 = vadd.f32 %v581, %v680
    %v682 = vpop.f32.mrf.mxu0
    %683 = vmatprep.mubr.bf16.mxu0 0
    %684 = vmatmul.mubr.bf16.gmra.mxu0 %v592
    %v685 = vpop.f32.mrf.mxu0
    %v686 = vadd.f32 %v581, %v685
    %v687 = vpop.f32.mrf.mxu0
    %v688 = vpop.f32.mrf.mxu0
    %v689 = vadd.f32 %v581, %v688
    %v690 = vpop.f32.mrf.mxu0
    %691 = vdwg.mxu0
    %692 = vst [vmem:[#allocation9] sm:$0xff] %v678
    %693 = vst [vmem:[#allocation9 + $0x8] sm:$0xff] %v681
    %694 = vst [vmem:[#allocation9 + $0x10] sm:$0xff] %v686
    %695 = vst [vmem:[#allocation9 + $0x18] sm:$0xff] %v689
    // Predicated region
    $region30: #{tpu_custom_call.1} parent=1 // pred_check
      _
    $region31: #{tpu_custom_call.1} parent=1 // pred_check_branch
      %697 = sbr.rel (0) target = $region33
    $region32: #{tpu_custom_call.1} parent=1 // pred_region
      %s699 = ssub.s32 512, 512
      %700 = vsyncadd [#allocation5], %s699
      %s701 = sshll.u32 [#allocation9], 4
      %s702 = int_to_ptr.vmem [resolvable:$true] %s701
      %707 = dma.vmem_to_hbm [thread:$0]  %s702, 512, %s4, [#allocation5], 128, 128, 8
    $region33: #{tpu_custom_call.1} parent=1 // pred_fallthru
      _
    // Predicated region
    $region34: #{tpu_custom_call.1} parent=1 // pred_check
      _
    $region35: #{tpu_custom_call.1} parent=1 // pred_check_branch
      %709 = sbr.rel (0) target = $region37
    $region36: #{tpu_custom_call.1} parent=1 // pred_region
      %710 = dma.done [#allocation5], 512
    $region37: #{tpu_custom_call.1} parent=1 // pred_fallthru
      _
    %711 = vsyncpa [#allocation4], 1
    %712 = vsyncpa [#allocation7], 1
    %713 = vsyncpa [#allocation5], 1

</llo_original>
